<compile_context>
chip_gen: v7x
topology: tpu7x:2x2x1
jax: 0.10.0
libtpu: 0.0.40
codegen_flags: <defaults>
</compile_context>

<pallas_src>
import jax
import jax.numpy as jnp
from jax.experimental import pallas as pl
from jax.experimental.pallas import tpu as pltpu


def attention_layer_kernel(batch_ref, x_ref, dv_ref, w1_ref, b1_ref, w2_ref, b2_ref,
                           out_ref, m_ref, l_ref, dvs_ref):
    p = pl.program_id(0)   # phase: 0 = global-softmax stats pass, 1 = normalize + write
    i = pl.program_id(1)   # row tile index

    @pl.when(jnp.logical_and(p == 0, i == 0))
    def _init():
        m_ref[...] = jnp.full_like(m_ref, -jnp.inf)
        l_ref[...] = jnp.zeros_like(l_ref)
        # hoisted once per kernel: per-graph score contribution (dv @ w2) -> [B, 1]
        dvs_ref[...] = jnp.sum(dv_ref[...] * w2_ref[...], axis=-1, keepdims=True)

    x = x_ref[...]                                                         # [tn, F] f32
    w2_row = w2_ref[...]                                                   # [1, D]

    # node_feature_transform: t = x @ W1 + b1   (MXU, f32 accumulation)
    t = jnp.dot(x, w1_ref[...], preferred_element_type=jnp.float32) + b1_ref[...]   # [tn, D]

    # attention score: t @ w2 as VPU multiply + XLU row-reduce; the diagram_vector
    # contribution is gathered as a scalar per row: one-hot(batch,B) @ (dv @ w2).
    bidx = batch_ref[...]                                                  # [tn, 1] int32 (-1 = pad)
    B = dv_ref.shape[0]
    onehot = (bidx == jax.lax.broadcasted_iota(jnp.int32, (bidx.shape[0], B), 1)
              ).astype(jnp.float32)                                        # [tn, B]
    dg_score = jnp.dot(onehot, dvs_ref[...],
                       preferred_element_type=jnp.float32)                 # [tn, 1]
    t_score = jnp.sum(t * w2_row, axis=-1, keepdims=True)                  # [tn, 1]
    s = t_score + dg_score + b2_ref[...]                                   # [tn, 1]
    # padded rows must not contribute to the global (dim=0) softmax
    s = jnp.where(bidx >= 0, s, jnp.float32(-1e30))

    @pl.when(p == 0)
    def _stats():
        # online running max / sum-of-exp across row tiles
        m_prev = m_ref[...]
        m_new = jnp.maximum(m_prev, jnp.max(s, axis=0, keepdims=True))
        l_ref[...] = (l_ref[...] * jnp.exp(m_prev - m_new)
                      + jnp.sum(jnp.exp(s - m_new), axis=0, keepdims=True))
        m_ref[...] = m_new

    @pl.when(p == 1)
    def _write():
        # normalize with finished global stats; reciprocal rides the EUP slot
        inv_l = pl.reciprocal(l_ref[...], approx=True)                     # [1, 1]
        scores = jnp.exp(s - m_ref[...]) * inv_l                           # [tn, 1]
        out_ref[...] = scores * t + x                                      # [tn, D]


def attention_layer(node_features, diagram_vector, batch, w1, b1, w2, b2, *, tile_n=256):
    """node_features: [N, F] f32; diagram_vector: [B, D] f32; batch: [N] int32."""
    N, F = node_features.shape
    B, D = diagram_vector.shape
    assert w1.shape == (F, D) and w2.shape == (D, 1)

    # row tile: multiple of 8 sublanes, no bigger than needed; conservative vs VMEM on all gens
    tile_n = max(8, min(int(tile_n), int(pl.next_power_of_2(max(N, 8)))))
    tile_n = -(-tile_n // 8) * 8
    n_tiles = pl.cdiv(N, tile_n)
    n_pad = n_tiles * tile_n

    x = node_features.astype(jnp.float32)
    bidx = batch.astype(jnp.int32).reshape(N, 1)
    if n_pad != N:
        x = jnp.pad(x, ((0, n_pad - N), (0, 0)))
        bidx = jnp.pad(bidx, ((0, n_pad - N), (0, 0)), constant_values=-1)

    out = pl.pallas_call(
        attention_layer_kernel,
        out_shape=jax.ShapeDtypeStruct((n_pad, D), jnp.float32),
        grid_spec=pltpu.PrefetchScalarGridSpec(
            num_scalar_prefetch=0,
            grid=(2, n_tiles),                                  # (phase, row tile)
            in_specs=[
                pl.BlockSpec((tile_n, 1), lambda p, i: (i, 0)),   # batch ids
                pl.BlockSpec((tile_n, F), lambda p, i: (i, 0)),   # node features
                pl.BlockSpec((B, D),      lambda p, i: (0, 0)),   # diagram_vector (VMEM resident)
                pl.BlockSpec((F, D),      lambda p, i: (0, 0)),   # w1
                pl.BlockSpec((1, D),      lambda p, i: (0, 0)),   # b1
                pl.BlockSpec((1, D),      lambda p, i: (0, 0)),   # w2 as a row
                pl.BlockSpec((1, 1),      lambda p, i: (0, 0)),   # b2
            ],
            # phase 0 never writes: pin its output block index at 0 so no garbage
            # writeback happens; phase 1 walks the real row tiles.
            out_specs=pl.BlockSpec((tile_n, D), lambda p, i: (p * i, 0)),
            scratch_shapes=[pltpu.VMEM((1, 1), jnp.float32),      # running max
                            pltpu.VMEM((1, 1), jnp.float32),      # running sum-exp
                            pltpu.VMEM((B, 1), jnp.float32)],     # cached dv @ w2
        ),
        compiler_params=pltpu.CompilerParams(
            # phase axis is sequential by construction; row-tile axis carries the
            # online max/sum scratch -> both "arbitrary".
            dimension_semantics=("arbitrary", "arbitrary"),
            vmem_limit_bytes=32 * 1024 * 1024,   # fits v7x's 64 MiB physical VMEM
        ),
    )(bidx, x,
      diagram_vector.astype(jnp.float32),
      w1.astype(jnp.float32),
      b1.reshape(1, D).astype(jnp.float32),
      w2.reshape(1, D).astype(jnp.float32),
      b2.reshape(1, 1).astype(jnp.float32))
    return out[:N]


def attention_layer_ref(node_features, diagram_vector, batch, w1, b1, w2, b2):
    """Pure-JAX reference mirroring the PyTorch forward."""
    t = node_features @ w1 + b1.reshape(1, -1)
    s = (t + diagram_vector[batch]) @ w2 + b2.reshape(1, 1)
    s = jax.nn.softmax(s, axis=0)
    return s * t + node_features


if __name__ == "__main__":
    key = jax.random.PRNGKey(0)
    N, B = 12, 2                # 12 nodes across 2 graphs (exercises padding + 2 row tiles)
    F = D = 32                  # residual add requires node_feature_size == diagram_feature_size

    k0, k1, k2, k3, k4, k5 = jax.random.split(key, 6)
    node_features  = jax.random.normal(k0, (N, F), dtype=jnp.float32)
    diagram_vector = jax.random.normal(k1, (B, D), dtype=jnp.float32)
    batch = jnp.array([0] * 6 + [1] * 6, dtype=jnp.int32)

    # PyTorch-style Linear init (uniform(-1/sqrt(fan_in), 1/sqrt(fan_in))), weights transposed
    bound1 = 1.0 / (F ** 0.5)
    w1 = jax.random.uniform(k2, (F, D), jnp.float32, -bound1, bound1)
    b1 = jax.random.uniform(k3, (D,),   jnp.float32, -bound1, bound1)
    bound2 = 1.0 / (D ** 0.5)
    w2 = jax.random.uniform(k4, (D, 1), jnp.float32, -bound2, bound2)
    b2 = jax.random.uniform(k5, (1,),   jnp.float32, -bound2, bound2)

    out = attention_layer(node_features, diagram_vector, batch, w1, b1, w2, b2, tile_n=8)
    out = jax.block_until_ready(out)

    ref = attention_layer_ref(node_features, diagram_vector, batch, w1, b1, w2, b2)
    assert out.shape == (N, D)
    # tolerance accounts for the approx EUP reciprocal and the re-associated score dot
    assert jnp.allclose(out, ref, atol=5e-3, rtol=5e-3), "mismatch vs reference"
    print("KERNEL_OK")
</pallas_src>

<mosaic_0001>
module attributes {stable_mosaic.version = 11 : i64} {
  func.func @attention_layer_kernel(%arg0: i32, %arg1: i32, %arg2: memref<8x1xi32, #tpu.memory_space<vmem>>, %arg3: memref<8x32xf32, #tpu.memory_space<vmem>>, %arg4: memref<2x32xf32, #tpu.memory_space<vmem>>, %arg5: memref<32x32xf32, #tpu.memory_space<vmem>>, %arg6: memref<1x32xf32, #tpu.memory_space<vmem>>, %arg7: memref<1x32xf32, #tpu.memory_space<vmem>>, %arg8: memref<1x1xf32, #tpu.memory_space<vmem>>, %arg9: memref<8x32xf32, #tpu.memory_space<vmem>>, %arg10: memref<1x1xf32, #tpu.memory_space<vmem>>, %arg11: memref<1x1xf32, #tpu.memory_space<vmem>>, %arg12: memref<2x1xf32, #tpu.memory_space<vmem>>) attributes {dimension_semantics = [#tpu.dimension_semantics<arbitrary>, #tpu.dimension_semantics<arbitrary>], iteration_bounds = array<i64: 2, 2>, scalar_prefetch = 0 : i64, scratch_operands = 3 : i64, tpu.core_type = #tpu.core_type<tc>, window_params = [{transform_indices = @transform_0, window_bounds = array<i64: 8, 1>}, {transform_indices = @transform_1, window_bounds = array<i64: 8, 32>}, {pipeline_mode = #tpu.pipeline_mode<synchronous>, transform_indices = @transform_2, window_bounds = array<i64: 2, 32>}, {pipeline_mode = #tpu.pipeline_mode<synchronous>, transform_indices = @transform_3, window_bounds = array<i64: 32, 32>}, {pipeline_mode = #tpu.pipeline_mode<synchronous>, transform_indices = @transform_4, window_bounds = array<i64: 1, 32>}, {pipeline_mode = #tpu.pipeline_mode<synchronous>, transform_indices = @transform_5, window_bounds = array<i64: 1, 32>}, {pipeline_mode = #tpu.pipeline_mode<synchronous>, transform_indices = @transform_6, window_bounds = array<i64: 1, 1>}, {transform_indices = @transform_7, window_bounds = array<i64: 8, 32>}]} {
    %c0_i32 = arith.constant 0 : i32
    %0 = arith.cmpi eq, %arg0, %c0_i32 : i32
    %c0_i32_0 = arith.constant 0 : i32
    %1 = arith.cmpi eq, %arg1, %c0_i32_0 : i32
    %2 = arith.andi %0, %1 : i1
    %3 = arith.extui %2 : i1 to i32
    %c0_i32_1 = arith.constant 0 : i32
    %4 = arith.cmpi ne, %3, %c0_i32_1 : i32
    scf.if %4 {
      %cst_22 = arith.constant 0xFF800000 : f32
      %38 = vector.broadcast %cst_22 : f32 to vector<1x1xf32>
      %c0_23 = arith.constant 0 : index
      %c0_24 = arith.constant 0 : index
      %39 = vector.load %arg10[%c0_23, %c0_24] : memref<1x1xf32, #tpu.memory_space<vmem>>, vector<1x1xf32>
      tpu.vector_store %arg10[%c0_23, %c0_24], %38 {strides = array<i32>} : memref<1x1xf32, #tpu.memory_space<vmem>>, vector<1x1xf32>,
      %cst_25 = arith.constant 0.000000e+00 : f32
      %40 = vector.broadcast %cst_25 : f32 to vector<1x1xf32>
      %c0_26 = arith.constant 0 : index
      %c0_27 = arith.constant 0 : index
      %41 = vector.load %arg11[%c0_26, %c0_27] : memref<1x1xf32, #tpu.memory_space<vmem>>, vector<1x1xf32>
      tpu.vector_store %arg11[%c0_26, %c0_27], %40 {strides = array<i32>} : memref<1x1xf32, #tpu.memory_space<vmem>>, vector<1x1xf32>,
      %c0_28 = arith.constant 0 : index
      %c0_29 = arith.constant 0 : index
      %42 = vector.load %arg4[%c0_28, %c0_29] : memref<2x32xf32, #tpu.memory_space<vmem>>, vector<2x32xf32>
      %c0_30 = arith.constant 0 : index
      %c0_31 = arith.constant 0 : index
      %43 = vector.load %arg7[%c0_30, %c0_31] : memref<1x32xf32, #tpu.memory_space<vmem>>, vector<1x32xf32>
      %44 = vector.broadcast %43 : vector<1x32xf32> to vector<2x32xf32>
      %45 = arith.mulf %42, %44 : vector<2x32xf32>
      %cst_32 = arith.constant dense<0.000000e+00> : vector<2xf32>
      %46 = vector.multi_reduction <add>, %45, %cst_32 [1] : vector<2x32xf32> to vector<2xf32>
      %47 = vector.shape_cast %46 : vector<2xf32> to vector<2x1xf32>
      %c0_33 = arith.constant 0 : index
      %c0_34 = arith.constant 0 : index
      %48 = vector.load %arg12[%c0_33, %c0_34] : memref<2x1xf32, #tpu.memory_space<vmem>>, vector<2x1xf32>
      tpu.vector_store %arg12[%c0_33, %c0_34], %47 {strides = array<i32>} : memref<2x1xf32, #tpu.memory_space<vmem>>, vector<2x1xf32>,
    } else {
    }
    %c0 = arith.constant 0 : index
    %c0_2 = arith.constant 0 : index
    %5 = vector.load %arg3[%c0, %c0_2] : memref<8x32xf32, #tpu.memory_space<vmem>>, vector<8x32xf32>
    %c0_3 = arith.constant 0 : index
    %c0_4 = arith.constant 0 : index
    %6 = vector.load %arg7[%c0_3, %c0_4] : memref<1x32xf32, #tpu.memory_space<vmem>>, vector<1x32xf32>
    %c0_5 = arith.constant 0 : index
    %c0_6 = arith.constant 0 : index
    %7 = vector.load %arg5[%c0_5, %c0_6] : memref<32x32xf32, #tpu.memory_space<vmem>>, vector<32x32xf32>
    %cst = arith.constant dense<0.000000e+00> : vector<8x32xf32>
    %8 = tpu.matmul %5, %7, %cst {dimension_numbers = #tpu.dot_dimension_numbers<[1], [0], [0], [1], [0, 0, 1, 1], [], []>} : vector<8x32xf32>, vector<32x32xf32>, vector<8x32xf32> -> vector<8x32xf32>
    %c0_7 = arith.constant 0 : index
    %c0_8 = arith.constant 0 : index
    %9 = vector.load %arg6[%c0_7, %c0_8] : memref<1x32xf32, #tpu.memory_space<vmem>>, vector<1x32xf32>
    %10 = vector.broadcast %9 : vector<1x32xf32> to vector<8x32xf32>
    %11 = arith.addf %8, %10 : vector<8x32xf32>
    %c0_9 = arith.constant 0 : index
    %c0_10 = arith.constant 0 : index
    %12 = vector.load %arg2[%c0_9, %c0_10] : memref<8x1xi32, #tpu.memory_space<vmem>>, vector<8x1xi32>
    %13 = tpu.iota {dimensions = array<i32: 1>} : vector<8x2xi32>
    %14 = vector.broadcast %12 : vector<8x1xi32> to vector<8x2xi32>
    %15 = arith.cmpi eq, %14, %13 : vector<8x2xi32>
    %16 = arith.extui %15 : vector<8x2xi1> to vector<8x2xi32>
    %17 = arith.sitofp %16 : vector<8x2xi32> to vector<8x2xf32>
    %c0_11 = arith.constant 0 : index
    %c0_12 = arith.constant 0 : index
    %18 = vector.load %arg12[%c0_11, %c0_12] : memref<2x1xf32, #tpu.memory_space<vmem>>, vector<2x1xf32>
    %cst_13 = arith.constant dense<0.000000e+00> : vector<8x1xf32>
    %19 = tpu.matmul %17, %18, %cst_13 {dimension_numbers = #tpu.dot_dimension_numbers<[1], [0], [0], [1], [0, 0, 1, 1], [], []>} : vector<8x2xf32>, vector<2x1xf32>, vector<8x1xf32> -> vector<8x1xf32>
    %20 = vector.broadcast %6 : vector<1x32xf32> to vector<8x32xf32>
    %21 = arith.mulf %11, %20 : vector<8x32xf32>
    %cst_14 = arith.constant dense<0.000000e+00> : vector<8xf32>
    %22 = vector.multi_reduction <add>, %21, %cst_14 [1] : vector<8x32xf32> to vector<8xf32>
    %23 = vector.shape_cast %22 : vector<8xf32> to vector<8x1xf32>
    %24 = arith.addf %23, %19 : vector<8x1xf32>
    %c0_15 = arith.constant 0 : index
    %c0_16 = arith.constant 0 : index
    %25 = vector.load %arg8[%c0_15, %c0_16] : memref<1x1xf32, #tpu.memory_space<vmem>>, vector<1x1xf32>
    %26 = vector.broadcast %25 : vector<1x1xf32> to vector<8x1xf32>
    %27 = arith.addf %24, %26 : vector<8x1xf32>
    %c0_i32_17 = arith.constant 0 : i32
    %28 = vector.broadcast %c0_i32_17 : i32 to vector<8x1xi32>
    %29 = arith.cmpi sge, %12, %28 : vector<8x1xi32>
    %cst_18 = arith.constant -1.000000e+30 : f32
    %30 = vector.broadcast %cst_18 : f32 to vector<8x1xf32>
    %31 = arith.select %29, %27, %30 : vector<8x1xi1>, vector<8x1xf32>
    %c0_i32_19 = arith.constant 0 : i32
    %32 = arith.cmpi eq, %arg0, %c0_i32_19 : i32
    %33 = arith.extui %32 : i1 to i32
    %c0_i32_20 = arith.constant 0 : i32
    %34 = arith.cmpi ne, %33, %c0_i32_20 : i32
    scf.if %34 {
      %c0_22 = arith.constant 0 : index
      %c0_23 = arith.constant 0 : index
      %38 = vector.load %arg10[%c0_22, %c0_23] : memref<1x1xf32, #tpu.memory_space<vmem>>, vector<1x1xf32>
      %cst_24 = arith.constant dense<0xFF800000> : vector<1xf32>
      %39 = vector.multi_reduction <maximumf>, %31, %cst_24 [0] : vector<8x1xf32> to vector<1xf32>
      %40 = vector.shape_cast %39 : vector<1xf32> to vector<1x1xf32>
      %41 = arith.maximumf %38, %40 : vector<1x1xf32>
      %c0_25 = arith.constant 0 : index
      %c0_26 = arith.constant 0 : index
      %42 = vector.load %arg11[%c0_25, %c0_26] : memref<1x1xf32, #tpu.memory_space<vmem>>, vector<1x1xf32>
      %43 = arith.subf %38, %41 : vector<1x1xf32>
      %44 = math.exp %43 : vector<1x1xf32>
      %45 = arith.mulf %42, %44 : vector<1x1xf32>
      %46 = vector.broadcast %41 : vector<1x1xf32> to vector<8x1xf32>
      %47 = arith.subf %31, %46 : vector<8x1xf32>
      %48 = math.exp %47 : vector<8x1xf32>
      %cst_27 = arith.constant dense<0.000000e+00> : vector<1xf32>
      %49 = vector.multi_reduction <add>, %48, %cst_27 [0] : vector<8x1xf32> to vector<1xf32>
      %50 = vector.shape_cast %49 : vector<1xf32> to vector<1x1xf32>
      %51 = arith.addf %45, %50 : vector<1x1xf32>
      %c0_28 = arith.constant 0 : index
      %c0_29 = arith.constant 0 : index
      %52 = vector.load %arg11[%c0_28, %c0_29] : memref<1x1xf32, #tpu.memory_space<vmem>>, vector<1x1xf32>
      tpu.vector_store %arg11[%c0_28, %c0_29], %51 {strides = array<i32>} : memref<1x1xf32, #tpu.memory_space<vmem>>, vector<1x1xf32>,
      %c0_30 = arith.constant 0 : index
      %c0_31 = arith.constant 0 : index
      %53 = vector.load %arg10[%c0_30, %c0_31] : memref<1x1xf32, #tpu.memory_space<vmem>>, vector<1x1xf32>
      tpu.vector_store %arg10[%c0_30, %c0_31], %41 {strides = array<i32>} : memref<1x1xf32, #tpu.memory_space<vmem>>, vector<1x1xf32>,
    } else {
    }
    %c1_i32 = arith.constant 1 : i32
    %35 = arith.cmpi eq, %arg0, %c1_i32 : i32
    %36 = arith.extui %35 : i1 to i32
    %c0_i32_21 = arith.constant 0 : i32
    %37 = arith.cmpi ne, %36, %c0_i32_21 : i32
    scf.if %37 {
      %c0_22 = arith.constant 0 : index
      %c0_23 = arith.constant 0 : index
      %38 = vector.load %arg11[%c0_22, %c0_23] : memref<1x1xf32, #tpu.memory_space<vmem>>, vector<1x1xf32>
      %39 = tpu.reciprocal %38 {approx = true} : vector<1x1xf32> -> vector<1x1xf32>
      %c0_24 = arith.constant 0 : index
      %c0_25 = arith.constant 0 : index
      %40 = vector.load %arg10[%c0_24, %c0_25] : memref<1x1xf32, #tpu.memory_space<vmem>>, vector<1x1xf32>
      %41 = vector.broadcast %40 : vector<1x1xf32> to vector<8x1xf32>
      %42 = arith.subf %31, %41 : vector<8x1xf32>
      %43 = math.exp %42 : vector<8x1xf32>
      %44 = vector.broadcast %39 : vector<1x1xf32> to vector<8x1xf32>
      %45 = arith.mulf %43, %44 : vector<8x1xf32>
      %46 = vector.broadcast %45 : vector<8x1xf32> to vector<8x32xf32>
      %47 = arith.mulf %46, %11 : vector<8x32xf32>
      %48 = arith.addf %47, %5 : vector<8x32xf32>
      %c0_26 = arith.constant 0 : index
      %c0_27 = arith.constant 0 : index
      %49 = vector.load %arg9[%c0_26, %c0_27] : memref<8x32xf32, #tpu.memory_space<vmem>>, vector<8x32xf32>
      tpu.vector_store %arg9[%c0_26, %c0_27], %48 {strides = array<i32>} : memref<8x32xf32, #tpu.memory_space<vmem>>, vector<8x32xf32>,
    } else {
    }
    return
  }
  func.func @transform_0(%arg0: i32, %arg1: i32) -> (i32, i32) {
    %c0_i32 = arith.constant 0 : i32
    %c0_i32_0 = arith.constant 0 : i32
    return %arg1, %c0_i32 : i32, i32
  }
  func.func @transform_1(%arg0: i32, %arg1: i32) -> (i32, i32) {
    %c0_i32 = arith.constant 0 : i32
    %c0_i32_0 = arith.constant 0 : i32
    return %arg1, %c0_i32 : i32, i32
  }
  func.func @transform_2(%arg0: i32, %arg1: i32) -> (i32, i32) {
    %c0_i32 = arith.constant 0 : i32
    %c0_i32_0 = arith.constant 0 : i32
    %c0_i32_1 = arith.constant 0 : i32
    return %c0_i32, %c0_i32_0 : i32, i32
  }
  func.func @transform_3(%arg0: i32, %arg1: i32) -> (i32, i32) {
    %c0_i32 = arith.constant 0 : i32
    %c0_i32_0 = arith.constant 0 : i32
    %c0_i32_1 = arith.constant 0 : i32
    return %c0_i32, %c0_i32_0 : i32, i32
  }
  func.func @transform_4(%arg0: i32, %arg1: i32) -> (i32, i32) {
    %c0_i32 = arith.constant 0 : i32
    %c0_i32_0 = arith.constant 0 : i32
    %c0_i32_1 = arith.constant 0 : i32
    return %c0_i32, %c0_i32_0 : i32, i32
  }
  func.func @transform_5(%arg0: i32, %arg1: i32) -> (i32, i32) {
    %c0_i32 = arith.constant 0 : i32
    %c0_i32_0 = arith.constant 0 : i32
    %c0_i32_1 = arith.constant 0 : i32
    return %c0_i32, %c0_i32_0 : i32, i32
  }
  func.func @transform_6(%arg0: i32, %arg1: i32) -> (i32, i32) {
    %c0_i32 = arith.constant 0 : i32
    %c0_i32_0 = arith.constant 0 : i32
    %c0_i32_1 = arith.constant 0 : i32
    return %c0_i32, %c0_i32_0 : i32, i32
  }
  func.func @transform_7(%arg0: i32, %arg1: i32) -> (i32, i32) {
    %0 = arith.muli %arg0, %arg1 : i32
    %c0_i32 = arith.constant 0 : i32
    %c0_i32_0 = arith.constant 0 : i32
    return %0, %c0_i32 : i32, i32
  }
}

</mosaic_0001>

<llo_original>
// kernel: tpu_custom_call.1
$region0: #{tpu_custom_call.1}
  #allocation0 [shape = 'u32[]', space=smem, size = 0x4, offset = 0x4, fixed_abs, tag = 'smem constant byte address 0x4 - core index']
  #allocation1 [shape = 'u32[144,128]{1,0:T(1,128)}', space=vmem, size = 0x12000, scoped, tag = 'internal scratch']
  #allocation2 [shape = 'f32[1,1]{1,0:T(1,128)}', space=vmem, size = 0x200, scoped, tag = 'scratch operand']
  #allocation3 [shape = 'f32[1,1]{1,0:T(1,128)}', space=vmem, size = 0x200, scoped, tag = 'scratch operand']
  #allocation4 [shape = 'f32[2,1]{1,0:T(2,128)}', space=vmem, size = 0x400, scoped, tag = 'scratch operand']
  #allocation5 [shape = 'f32[1,1]{1,0:T(1,128)S(1)}', space=vmem, size = 0x200, scoped, tag = 'scoped memory for tpu_custom_call.1']
  %s0 = inlined_call_operand.vmem [shape: s32[16,1], index: 0, kind: input, shape index: {}]
  %s1 = inlined_call_operand.hbm [shape: f32[16,32], index: 1, kind: input, shape index: {}]
  %s2 = inlined_call_operand.hbm [shape: f32[2,32], index: 2, kind: input, shape index: {}]
  %s3 = inlined_call_operand.vmem [shape: f32[32,32], index: 3, kind: input, shape index: {}]
  %s4 = inlined_call_operand.vmem [shape: f32[1,32], index: 4, kind: input, shape index: {}]
  %s5 = inlined_call_operand.vmem [shape: f32[1,32], index: 5, kind: input, shape index: {}]
  %s6 = inlined_call_operand.<no memory space> [shape: f32[1,1], index: 6, kind: input, shape index: {}]
  %s7 = inlined_call_operand.hbm [shape: f32[16,32], index: 7, kind: output, shape index: {}]
  %s8 = sld [smem:[#allocation0]]
  $region81: #{tpu_custom_call.1} parent=0
    _
  %s10 = ssub.s32 1, %s8
  %s11 = scalar_select 0, %s10, %s8
  %v12 = vstv %s6
  %13 = vst [vmem:[#allocation5] sm:$0x1] %v12
  $region1: #{tpu_custom_call.1} parent=0
    #allocation6 [shape = 'u8[8192]{0}', space=vmem, size = 0x2000, scoped, tag = 'input window, operand 1']
    #allocation7 [shape = 's32[2]{0}', space=sflag, size = 0x8, scoped, tag = 'scoped memory for tpu_custom_call.1']
    #allocation8 [shape = 's32[2]{0}', space=sflag, size = 0x8, scoped, tag = 'scoped memory for tpu_custom_call.1']
    #allocation9 [shape = 'u8[1024]{0}', space=vmem, size = 0x400, scoped, tag = 'input window, operand 2, single buffered']
    #allocation10 [shape = 's32[1]{0}', space=sflag, size = 0x4, scoped, tag = 'scoped memory for tpu_custom_call.1']
    #allocation11 [shape = 'u8[8192]{0}', space=vmem, size = 0x2000, scoped, tag = 'output window, operand 0']
    %14 = vsyncpa [#allocation7], 0
    %s15 = scalar_lea.sflag [#allocation7], 1
    %16 = vsyncpa %s15, 0
    %17 = vsyncpa [#allocation10], 0
    %18 = vsyncpa [#allocation8], 0
    %s19 = scalar_lea.sflag [#allocation8], 1
    %20 = vsyncpa %s19, 0
    loop: start=0, step=1, limit=6
    $region2: #{tpu_custom_call.1} parent=1 // loop_pre_header
      _
    $region3: #{tpu_custom_call.1} parent=1 // loop_header
      %s22 = sphi 0, %s26
      %p23 = scmp.ge.s32.totalorder %s22, 6
      %s29 = sphi 0, %s41
      %s30 = sphi 0, %s37
      %s31 = sphi 0, %s29
      %s32 = sphi 0, %s30
      %s33 = sphi 0, %s31
      %s34 = sphi 0, %s32
      %s44 = sphi 0, %s46
      %s47 = sphi 0, %s44
      %s48 = sphi 0, %s47
      %s64 = sphi 0, %s48
      %s70 = sphi 0, %s72
      %s73 = sphi 0, %s70
      %s74 = sphi 0, %s73
      %s90 = sphi 0, %s74
      %s94 = sphi 0, %s94
      %s96 = sphi 0, %s94
      %s97 = sphi 0, %s96
      %s111 = sphi 0, %s97
      %s115 = sphi 0, %s115
      %s117 = sphi 0, %s115
      %s118 = sphi 0, %s117
      %s132 = sphi 0, %s118
      %s136 = sphi 0, %s136
      %s138 = sphi 0, %s136
      %s139 = sphi 0, %s138
      %s153 = sphi 0, %s139
      %s157 = sphi 0, %s157
      %s159 = sphi 0, %s157
      %s160 = sphi 0, %s159
      %s174 = sphi 0, %s160
      %s178 = sphi 0, %s178
      %s180 = sphi 0, %s178
      %s181 = sphi 0, %s180
      %s195 = sphi 0, %s181
      %s203 = sphi 0, %s205
      %s206 = sphi 0, %s203
      %s207 = sphi 0, %s206
      %s223 = sphi 0, %s207
    $region4: #{tpu_custom_call.1} parent=1 // loop_header_branch
      %25 = sbr.rel (%p23) target = $region8
    $region5: #{tpu_custom_call.1} parent=1 // loop_body
      %s27 = ssub.s32 %s22, 1
      %s28 = ssub.s32 %s22, 2
      %s35 = sadd.s32 1, %s30
      %p36 = scmp.ge.s32.totalorder %s35, 2
      %s37 = scalar_select %p36, 0, %s35
      %s38 = sadd.s32 1, %s29
      %s39 = scalar_select %p36, %s38, %s29
      %p40 = scmp.ge.s32.totalorder %s39, 2
      %s41 = scalar_select %p40, 0, %s39
      %s42 = ssub.s32 %s30, %s37
      %p43 = scmp.eq.s32.totalorder %s42, 0
      %s45 = sadd.s32 %s44, 1
      %s46 = scalar_select %p43, %s44, %s45
      %p49 = pneg %p43
      %p50 = scmp.eq.s32.totalorder %s22, 3
      %p51 = por %p49, %p50
      %p52 = scmp.ne.s32.totalorder %s44, %s47
      %p53 = scmp.eq.s32.totalorder %s22, 0
      %p54 = por %p52, %p53
      %p55 = scmp.ne.s32.totalorder %s44, %s47
      %p56 = scmp.eq.s32.totalorder %s27, 3
      %p57 = por %p55, %p56
      %p58 = scmp.ne.s32.totalorder %s47, %s48
      %p59 = scmp.eq.s32.totalorder %s27, 0
      %p60 = por %p58, %p59
      %p61 = scmp.ne.s32.totalorder %s47, %s48
      %p62 = scmp.eq.s32.totalorder %s28, 3
      %p63 = por %p61, %p62
      %p65 = scmp.ne.s32.totalorder %s48, %s64
      %p66 = scmp.eq.s32.totalorder %s28, 0
      %p67 = por %p65, %p66
      %s68 = ssub.s32 %s30, %s37
      %p69 = scmp.eq.s32.totalorder %s68, 0
      %s71 = sadd.s32 %s70, 1
      %s72 = scalar_select %p69, %s70, %s71
      %p75 = pneg %p69
      %p76 = scmp.eq.s32.totalorder %s22, 3
      %p77 = por %p75, %p76
      %p78 = scmp.ne.s32.totalorder %s70, %s73
      %p79 = scmp.eq.s32.totalorder %s22, 0
      %p80 = por %p78, %p79
      %p81 = scmp.ne.s32.totalorder %s70, %s73
      %p82 = scmp.eq.s32.totalorder %s27, 3
      %p83 = por %p81, %p82
      %p84 = scmp.ne.s32.totalorder %s73, %s74
      %p85 = scmp.eq.s32.totalorder %s27, 0
      %p86 = por %p84, %p85
      %p87 = scmp.ne.s32.totalorder %s73, %s74
      %p88 = scmp.eq.s32.totalorder %s28, 3
      %p89 = por %p87, %p88
      %p91 = scmp.ne.s32.totalorder %s74, %s90
      %p92 = scmp.eq.s32.totalorder %s28, 0
      %p93 = por %p91, %p92
      %s95 = sadd.s32 %s94, 1
      %p98 = scmp.eq.s32.totalorder %s22, 3
      %p99 = scmp.ne.s32.totalorder %s94, %s96
      %p100 = scmp.eq.s32.totalorder %s22, 0
      %p101 = por %p99, %p100
      %p102 = scmp.ne.s32.totalorder %s94, %s96
      %p103 = scmp.eq.s32.totalorder %s27, 3
      %p104 = por %p102, %p103
      %p105 = scmp.ne.s32.totalorder %s96, %s97
      %p106 = scmp.eq.s32.totalorder %s27, 0
      %p107 = por %p105, %p106
      %p108 = scmp.ne.s32.totalorder %s96, %s97
      %p109 = scmp.eq.s32.totalorder %s28, 3
      %p110 = por %p108, %p109
      %p112 = scmp.ne.s32.totalorder %s97, %s111
      %p113 = scmp.eq.s32.totalorder %s28, 0
      %p114 = por %p112, %p113
      %s116 = sadd.s32 %s115, 1
      %p119 = scmp.eq.s32.totalorder %s22, 3
      %p120 = scmp.ne.s32.totalorder %s115, %s117
      %p121 = scmp.eq.s32.totalorder %s22, 0
      %p122 = por %p120, %p121
      %p123 = scmp.ne.s32.totalorder %s115, %s117
      %p124 = scmp.eq.s32.totalorder %s27, 3
      %p125 = por %p123, %p124
      %p126 = scmp.ne.s32.totalorder %s117, %s118
      %p127 = scmp.eq.s32.totalorder %s27, 0
      %p128 = por %p126, %p127
      %p129 = scmp.ne.s32.totalorder %s117, %s118
      %p130 = scmp.eq.s32.totalorder %s28, 3
      %p131 = por %p129, %p130
      %p133 = scmp.ne.s32.totalorder %s118, %s132
      %p134 = scmp.eq.s32.totalorder %s28, 0
      %p135 = por %p133, %p134
      %s137 = sadd.s32 %s136, 1
      %p140 = scmp.eq.s32.totalorder %s22, 3
      %p141 = scmp.ne.s32.totalorder %s136, %s138
      %p142 = scmp.eq.s32.totalorder %s22, 0
      %p143 = por %p141, %p142
      %p144 = scmp.ne.s32.totalorder %s136, %s138
      %p145 = scmp.eq.s32.totalorder %s27, 3
      %p146 = por %p144, %p145
      %p147 = scmp.ne.s32.totalorder %s138, %s139
      %p148 = scmp.eq.s32.totalorder %s27, 0
      %p149 = por %p147, %p148
      %p150 = scmp.ne.s32.totalorder %s138, %s139
      %p151 = scmp.eq.s32.totalorder %s28, 3
      %p152 = por %p150, %p151
      %p154 = scmp.ne.s32.totalorder %s139, %s153
      %p155 = scmp.eq.s32.totalorder %s28, 0
      %p156 = por %p154, %p155
      %s158 = sadd.s32 %s157, 1
      %p161 = scmp.eq.s32.totalorder %s22, 3
      %p162 = scmp.ne.s32.totalorder %s157, %s159
      %p163 = scmp.eq.s32.totalorder %s22, 0
      %p164 = por %p162, %p163
      %p165 = scmp.ne.s32.totalorder %s157, %s159
      %p166 = scmp.eq.s32.totalorder %s27, 3
      %p167 = por %p165, %p166
      %p168 = scmp.ne.s32.totalorder %s159, %s160
      %p169 = scmp.eq.s32.totalorder %s27, 0
      %p170 = por %p168, %p169
      %p171 = scmp.ne.s32.totalorder %s159, %s160
      %p172 = scmp.eq.s32.totalorder %s28, 3
      %p173 = por %p171, %p172
      %p175 = scmp.ne.s32.totalorder %s160, %s174
      %p176 = scmp.eq.s32.totalorder %s28, 0
      %p177 = por %p175, %p176
      %s179 = sadd.s32 %s178, 1
      %p182 = scmp.eq.s32.totalorder %s22, 3
      %p183 = scmp.ne.s32.totalorder %s178, %s180
      %p184 = scmp.eq.s32.totalorder %s22, 0
      %p185 = por %p183, %p184
      %p186 = scmp.ne.s32.totalorder %s178, %s180
      %p187 = scmp.eq.s32.totalorder %s27, 3
      %p188 = por %p186, %p187
      %p189 = scmp.ne.s32.totalorder %s180, %s181
      %p190 = scmp.eq.s32.totalorder %s27, 0
      %p191 = por %p189, %p190
      %p192 = scmp.ne.s32.totalorder %s180, %s181
      %p193 = scmp.eq.s32.totalorder %s28, 3
      %p194 = por %p192, %p193
      %p196 = scmp.ne.s32.totalorder %s181, %s195
      %p197 = scmp.eq.s32.totalorder %s28, 0
      %p198 = por %p196, %p197
      %s199 = smul.u32 %s29, %s30
      %s200 = smul.u32 %s41, %s37
      %s201 = ssub.s32 %s199, %s200
      %p202 = scmp.eq.s32.totalorder %s201, 0
      %s204 = sadd.s32 %s203, 1
      %s205 = scalar_select %p202, %s203, %s204
      %p208 = pneg %p202
      %p209 = scmp.eq.s32.totalorder %s22, 3
      %p210 = por %p208, %p209
      %p211 = scmp.ne.s32.totalorder %s203, %s206
      %p212 = scmp.eq.s32.totalorder %s22, 0
      %p213 = por %p211, %p212
      %p214 = scmp.ne.s32.totalorder %s203, %s206
      %p215 = scmp.eq.s32.totalorder %s27, 3
      %p216 = por %p214, %p215
      %p217 = scmp.ne.s32.totalorder %s206, %s207
      %p218 = scmp.eq.s32.totalorder %s27, 0
      %p219 = por %p217, %p218
      %p220 = scmp.ne.s32.totalorder %s206, %s207
      %p221 = scmp.eq.s32.totalorder %s28, 3
      %p222 = por %p220, %p221
      %p224 = scmp.ne.s32.totalorder %s207, %s223
      %p225 = scmp.eq.s32.totalorder %s28, 0
      %p226 = por %p224, %p225
      %p227 = scmp.le.s32.totalorder 1, %s22
      %p228 = scmp.lt.s32.totalorder %s22, 5
      %p229 = pnand %p227, %p228
      %p230 = pneg %p229
      // Predicated region
      $region9: #{tpu_custom_call.1} parent=5 // pred_check
        _
      $region10: #{tpu_custom_call.1} parent=5 // pred_check_branch
        %232 = sbr.rel (%p229) target = $region12
      $region11: #{tpu_custom_call.1} parent=5 // pred_region
        %s233 = ssub.s32 %s22, 1
        // Predicated region
        $region13: #{tpu_custom_call.1} parent=11 // pred_check
          %p234 = pneg %p107
        $region14: #{tpu_custom_call.1} parent=11 // pred_check_branch
          %236 = sbr.rel (%p234) target = $region16
        $region15: #{tpu_custom_call.1} parent=11 // pred_region
          %s238 = ssub.s32 32, 32
          %239 = vsyncadd [#allocation10], %s238
          %s241 = sshll.u32 [#allocation9], 4
          %s242 = int_to_ptr.vmem [resolvable:$true] %s241
          %244 = dma.hbm_to_vmem [thread:$0]  %s2, 32, %s242, [#allocation10]
        $region16: #{tpu_custom_call.1} parent=11 // pred_fallthru
          _
        // Predicated region
        $region17: #{tpu_custom_call.1} parent=11 // pred_check
          %p245 = pneg %p128
        $region18: #{tpu_custom_call.1} parent=11 // pred_check_branch
          %247 = sbr.rel (%p245) target = $region20
        $region19: #{tpu_custom_call.1} parent=11 // pred_region
          _
        $region20: #{tpu_custom_call.1} parent=11 // pred_fallthru
          _
        // Predicated region
        $region21: #{tpu_custom_call.1} parent=11 // pred_check
          %p248 = pneg %p149
        $region22: #{tpu_custom_call.1} parent=11 // pred_check_branch
          %250 = sbr.rel (%p248) target = $region24
        $region23: #{tpu_custom_call.1} parent=11 // pred_region
          _
        $region24: #{tpu_custom_call.1} parent=11 // pred_fallthru
          _
        // Predicated region
        $region25: #{tpu_custom_call.1} parent=11 // pred_check
          %p251 = pneg %p170
        $region26: #{tpu_custom_call.1} parent=11 // pred_check_branch
          %253 = sbr.rel (%p251) target = $region28
        $region27: #{tpu_custom_call.1} parent=11 // pred_region
          _
        $region28: #{tpu_custom_call.1} parent=11 // pred_fallthru
          _
        // Predicated region
        $region29: #{tpu_custom_call.1} parent=11 // pred_check
          %p254 = pneg %p191
        $region30: #{tpu_custom_call.1} parent=11 // pred_check_branch
          %256 = sbr.rel (%p254) target = $region32
        $region31: #{tpu_custom_call.1} parent=11 // pred_region
          _
        $region32: #{tpu_custom_call.1} parent=11 // pred_fallthru
          _
      $region12: #{tpu_custom_call.1} parent=5 // pred_fallthru
        _
      %p257 = scmp.lt.s32.totalorder %s22, 4
      // Predicated region
      $region33: #{tpu_custom_call.1} parent=5 // pred_check
        %p258 = pneg %p257
      $region34: #{tpu_custom_call.1} parent=5 // pred_check_branch
        %260 = sbr.rel (%p258) target = $region36
      $region35: #{tpu_custom_call.1} parent=5 // pred_region
        // Predicated region
        $region37: #{tpu_custom_call.1} parent=35 // pred_check
          %p261 = pneg %p54
        $region38: #{tpu_custom_call.1} parent=35 // pred_check_branch
          %263 = sbr.rel (%p261) target = $region40
        $region39: #{tpu_custom_call.1} parent=35 // pred_region
          %p264 = scmp.lt.s32.totalorder %s30, 1
          %s265 = scalar_select %p264, %s30, 1
          %s266 = smul.addr %s265, 8
          %s267 = scalar_lea.vmem %s0, %s266
        $region40: #{tpu_custom_call.1} parent=35 // pred_fallthru
          _
        // Predicated region
        $region41: #{tpu_custom_call.1} parent=35 // pred_check
          %p268 = pneg %p80
        $region42: #{tpu_custom_call.1} parent=35 // pred_check_branch
          %270 = sbr.rel (%p268) target = $region44
        $region43: #{tpu_custom_call.1} parent=35 // pred_region
          %s271 = sand.u32 %s70, 1
          %s272 = scalar_lea.sflag [#allocation7], %s271
          %s273 = sand.u32 %s70, 1
          %s274 = smul.addr %s273, 8
          %s275 = scalar_lea.vmem [#allocation6], %s274
          %s277 = ssub.s32 128, 128
          %278 = vsyncadd %s272, %s277
          %s279 = smul.addr %s30, 128
          %s280 = scalar_lea.hbm %s1, %s279
          %s282 = sshll.u32 %s275, 4
          %s283 = int_to_ptr.vmem [resolvable:$true] %s282
          %285 = dma.hbm_to_vmem [thread:$0]  %s280, 128, %s283, %s272
        $region44: #{tpu_custom_call.1} parent=35 // pred_fallthru
          _
      $region36: #{tpu_custom_call.1} parent=5 // pred_fallthru
        _
      %p286 = scmp.le.s32.totalorder 1, %s22
      %p287 = scmp.lt.s32.totalorder %s22, 5
      %p288 = pnand %p286, %p287
      %p289 = pneg %p288
      // Predicated region
      $region45: #{tpu_custom_call.1} parent=5 // pred_check
        _
      $region46: #{tpu_custom_call.1} parent=5 // pred_check_branch
        %291 = sbr.rel (%p288) target = $region48
      $region47: #{tpu_custom_call.1} parent=5 // pred_region
        %s292 = ssub.s32 %s22, 1
        %s293 = sand.u32 %s73, 1
        %s294 = scalar_lea.sflag [#allocation7], %s293
        %s295 = sand.u32 %s73, 1
        %s296 = smul.addr %s295, 8
        %s297 = scalar_lea.vmem [#allocation6], %s296
        // Predicated region
        $region49: #{tpu_custom_call.1} parent=47 // pred_check
          %p298 = pneg %p86
        $region50: #{tpu_custom_call.1} parent=47 // pred_check_branch
          %300 = sbr.rel (%p298) target = $region52
        $region51: #{tpu_custom_call.1} parent=47 // pred_region
          %301 = dma.done %s294, 128
        $region52: #{tpu_custom_call.1} parent=47 // pred_fallthru
          _
        // Predicated region
        $region53: #{tpu_custom_call.1} parent=47 // pred_check
          %p302 = pneg %p107
        $region54: #{tpu_custom_call.1} parent=47 // pred_check_branch
          %304 = sbr.rel (%p302) target = $region56
        $region55: #{tpu_custom_call.1} parent=47 // pred_region
          %305 = dma.done [#allocation10], 32
        $region56: #{tpu_custom_call.1} parent=47 // pred_fallthru
          _
        %p306 = scmp.lt.s32.totalorder %s32, 1
        %s307 = scalar_select %p306, %s32, 1
        %s308 = smul.addr %s307, 8
        %s309 = scalar_lea.vmem %s0, %s308
        %p310 = pneg %p60
        %p311 = pneg %p57
        %s312 = sand.u32 %s73, 1
        %s313 = scalar_lea.sflag [#allocation7], %s312
        %s314 = sand.u32 %s73, 1
        %s315 = smul.addr %s314, 8
        %s316 = scalar_lea.vmem [#allocation6], %s315
        %p317 = pneg %p86
        %p318 = pneg %p83
        %p319 = pneg %p107
        %p320 = pneg %p104
        %p321 = pneg %p128
        %p322 = pneg %p125
        %p323 = pneg %p149
        %p324 = pneg %p146
        %p325 = pneg %p170
        %p326 = pneg %p167
        %p327 = pneg %p191
        %p328 = pneg %p188
        %p329 = pneg %p219
        %p330 = pneg %p216
        %s331 = sand.u32 %s206, 1
        %s332 = scalar_lea.sflag [#allocation8], %s331
        %s333 = sand.u32 %s206, 1
        %s334 = smul.addr %s333, 8
        %s335 = scalar_lea.vmem [#allocation11], %s334
        %p336 = scmp.lt.s32.totalorder %s32, 1
        %s337 = scalar_select %p336, %s32, 1
        %s338 = smul.addr %s337, 8
        %s339 = scalar_lea.vmem %s0, %s338
        %s340 = smul.u32 %s31, %s32
        %p341 = scmp.eq.s32.totalorder %s31, 0
        %p342 = scmp.eq.s32.totalorder %s32, 0
        %p343 = pnand %p341, %p342
        %p344 = pneg %p343
        // Predicated region
        $region57: #{tpu_custom_call.1} parent=47 // pred_check
          _
        $region58: #{tpu_custom_call.1} parent=47 // pred_check_branch
          %346 = sbr.rel (%p343) target = $region60
        $region59: #{tpu_custom_call.1} parent=47 // pred_region
          %vm347 = vcmask 0
          %348 = vst.msk [vmem:[#allocation2] sm:$0x1] %vm347, -inf
          %349 = vst.msk [vmem:[#allocation3] sm:$0x1] %vm347, 0.0
          %v350 = vld [vmem:[#allocation9] sm:$0x3]
          %v351 = vld [vmem:[%s5] sm:$0x1]
          %v353 = vlaneseq
          %v354 = vshrl.u32 %v353, 7
          %v355 = vsub.s32 0, %v354
          %v356 = vrot.slane %v351, %v355
          %v358 = vmul.f32 %v350, %v356
          %vm359 = vcmask 254976
          %v360 = vsel %vm359, %v358, 0.0
          %361 = vadd.xlane.f32.xlu0 %v360
          %v362 = vpop.xlane.xlu0 %361
          %vm363 = vcmask 1024
          %364 = vst.msk [vmem:[#allocation4] sm:$0x3] %vm363, %v362
        $region60: #{tpu_custom_call.1} parent=47 // pred_fallthru
          _
        %v365 = vld [vmem:[%s297] sm:$0xff]
        %v366 = vld [vmem:[%s5] sm:$0x1]
        %v367 = vld [vmem:[%s3] sm:$0xff]
        %v368 = vld [vmem:[%s3 + $0x8] sm:$0xff]
        %v369 = vld [vmem:[%s3 + $0x10] sm:$0xff]
        %v370 = vld [vmem:[%s3 + $0x18] sm:$0xff]
        %v371 = vld [vmem:[%s4] sm:$0x1]
        %v373 = vlaneseq
        %v374 = vshrl.u32 %v373, 7
        %v375 = vsub.s32 0, %v374
        %v376 = vrot.slane %v371, %v375
        %vm378 = vcmask 261120
        %v380 = vsel %vm378, %v365, 0
        %382 = vmatprep.subr.mxu0 0.0
        %383 = vmatpush1.msra.mxu0 %v367
        %384 = vmatprep.subr.mxu0 0.0
        %385 = vmatpush1.msra.mxu0 %v368
        %386 = vmatprep.subr.mxu0 0.0
        %387 = vmatpush1.msra.mxu0 %v369
        %388 = vmatprep.subr.mxu0 0.0
        %389 = vmatpush1.msra.mxu0 %v370
        %390 = vmatprep.subr.mxu0 0.0
        %391 = vmatpush1.msra.mxu0 0.0
        %392 = vmatprep.subr.mxu0 0.0
        %393 = vmatpush1.msra.mxu0 0.0
        %394 = vmatprep.subr.mxu0 0.0
        %395 = vmatpush1.msra.mxu0 0.0
        %396 = vmatprep.subr.mxu0 0.0
        %397 = vmatpush1.msra.mxu0 0.0
        %398 = vmatprep.subr.mxu0 0.0
        %399 = vmatpush1.msra.mxu0 0.0
        %400 = vmatprep.subr.mxu0 0.0
        %401 = vmatpush1.msra.mxu0 0.0
        %402 = vmatprep.subr.mxu0 0.0
        %403 = vmatpush1.msra.mxu0 0.0
        %404 = vmatprep.subr.mxu0 0.0
        %405 = vmatpush1.msra.mxu0 0.0
        %406 = vmatprep.subr.mxu0 0.0
        %407 = vmatpush1.msra.mxu0 0.0
        %408 = vmatprep.subr.mxu0 0.0
        %409 = vmatpush1.msra.mxu0 0.0
        %410 = vmatprep.subr.mxu0 0.0
        %411 = vmatpush1.msra.mxu0 0.0
        %412 = vmatprep.subr.mxu0 0.0
        %413 = vmatpush1.msra.mxu0 0.0
        %414 = vmatprep.subr.mxu0 0.0
        %415 = vmatpush1.msra.mxu0 0.0
        %416 = vmatprep.subr.mxu0 0.0
        %417 = vmatpush1.msra.mxu0 0.0
        %418 = vmatprep.subr.mxu0 0.0
        %419 = vmatpush1.msra.mxu0 0.0
        %420 = vmatprep.subr.mxu0 0.0
        %421 = vmatpush1.msra.mxu0 0.0
        %422 = vmatprep.subr.mxu0 0.0
        %423 = vmatpush1.msra.mxu0 0.0
        %424 = vmatprep.subr.mxu0 0.0
        %425 = vmatpush1.msra.mxu0 0.0
        %426 = vmatprep.subr.mxu0 0.0
        %427 = vmatpush1.msra.mxu0 0.0
        %428 = vmatprep.subr.mxu0 0.0
        %429 = vmatpush1.msra.mxu0 0.0
        %430 = vmatprep.subr.mxu0 0.0
        %431 = vmatpush1.msra.mxu0 0.0
        %432 = vmatprep.subr.mxu0 0.0
        %433 = vmatpush1.msra.mxu0 0.0
        %434 = vmatprep.subr.mxu0 0.0
        %435 = vmatpush1.msra.mxu0 0.0
        %436 = vmatprep.subr.mxu0 0.0
        %437 = vmatpush1.msra.mxu0 0.0
        %438 = vmatprep.subr.mxu0 0.0
        %439 = vmatpush1.msra.mxu0 0.0
        %440 = vmatprep.subr.mxu0 0.0
        %441 = vmatpush1.msra.mxu0 0.0
        %442 = vmatprep.subr.mxu0 0.0
        %443 = vmatpush1.msra.mxu0 0.0
        %444 = vmatprep.subr.mxu0 0.0
        %445 = vmatpush1.msra.mxu0 0.0
        %446 = vmatprep.mubr.f32.mxu0 0.0
        %447 = vmatmul.mubr.f32.gmra.mrb[0].mxu0 %v380
        %v448 = vpop.f32.mrb[0].mxu0
        %v449 = vadd.f32 %v376, %v448
        %v450 = vpop.f32.mrb[0].mxu0
        %451 = vdwg.mxu0
        %v452 = vld [vmem:[%s339] sm:$0xff]
        %v453 = vlaneseq
        %v454 = vand.u32 %v453, 127
        %455 = vset.pattern.permute.xlu0 0
        %456 = vperm.xlu0 %455, %v452
        %v457 = vpop.permute.xlu0 %456
        %vm458 = vcmp.eq.s32.totalorder %v457, %v454
        %v459 = vsel %vm458, 1, 0
        %v460 = vcvt.s32.f32 %v459
        %v461 = vld [vmem:[#allocation4] sm:$0x3]
        %vm462 = vcmask 15360
        %v464 = vsel %vm462, %v460, 0
        %vm466 = vcmask 1041408
        %v468 = vsel %vm466, %v461, 0
        %470 = vmatprep.subr.mxu0 0.0
        %471 = vmatpush1.msra.mxu0 %v468
        %472 = vmatprep.subr.mxu0 0.0
        %473 = vmatpush1.msra.mxu0 0.0
        %474 = vmatprep.subr.mxu0 0.0
        %475 = vmatpush1.msra.mxu0 0.0
        %476 = vmatprep.subr.mxu0 0.0
        %477 = vmatpush1.msra.mxu0 0.0
        %478 = vmatprep.subr.mxu0 0.0
        %479 = vmatpush1.msra.mxu0 0.0
        %480 = vmatprep.subr.mxu0 0.0
        %481 = vmatpush1.msra.mxu0 0.0
        %482 = vmatprep.subr.mxu0 0.0
        %483 = vmatpush1.msra.mxu0 0.0
        %484 = vmatprep.subr.mxu0 0.0
        %485 = vmatpush1.msra.mxu0 0.0
        %486 = vmatprep.subr.mxu0 0.0
        %487 = vmatpush1.msra.mxu0 0.0
        %488 = vmatprep.subr.mxu0 0.0
        %489 = vmatpush1.msra.mxu0 0.0
        %490 = vmatprep.subr.mxu0 0.0
        %491 = vmatpush1.msra.mxu0 0.0
        %492 = vmatprep.subr.mxu0 0.0
        %493 = vmatpush1.msra.mxu0 0.0
        %494 = vmatprep.subr.mxu0 0.0
        %495 = vmatpush1.msra.mxu0 0.0
        %496 = vmatprep.subr.mxu0 0.0
        %497 = vmatpush1.msra.mxu0 0.0
        %498 = vmatprep.subr.mxu0 0.0
        %499 = vmatpush1.msra.mxu0 0.0
        %500 = vmatprep.subr.mxu0 0.0
        %501 = vmatpush1.msra.mxu0 0.0
        %502 = vmatprep.subr.mxu0 0.0
        %503 = vmatpush1.msra.mxu0 0.0
        %504 = vmatprep.subr.mxu0 0.0
        %505 = vmatpush1.msra.mxu0 0.0
        %506 = vmatprep.subr.mxu0 0.0
        %507 = vmatpush1.msra.mxu0 0.0
        %508 = vmatprep.subr.mxu0 0.0
        %509 = vmatpush1.msra.mxu0 0.0
        %510 = vmatprep.subr.mxu0 0.0
        %511 = vmatpush1.msra.mxu0 0.0
        %512 = vmatprep.subr.mxu0 0.0
        %513 = vmatpush1.msra.mxu0 0.0
        %514 = vmatprep.subr.mxu0 0.0
        %515 = vmatpush1.msra.mxu0 0.0
        %516 = vmatprep.subr.mxu0 0.0
        %517 = vmatpush1.msra.mxu0 0.0
        %518 = vmatprep.subr.mxu0 0.0
        %519 = vmatpush1.msra.mxu0 0.0
        %520 = vmatprep.subr.mxu0 0.0
        %521 = vmatpush1.msra.mxu0 0.0
        %522 = vmatprep.subr.mxu0 0.0
        %523 = vmatpush1.msra.mxu0 0.0
        %524 = vmatprep.subr.mxu0 0.0
        %525 = vmatpush1.msra.mxu0 0.0
        %526 = vmatprep.subr.mxu0 0.0
        %527 = vmatpush1.msra.mxu0 0.0
        %528 = vmatprep.subr.mxu0 0.0
        %529 = vmatpush1.msra.mxu0 0.0
        %530 = vmatprep.subr.mxu0 0.0
        %531 = vmatpush1.msra.mxu0 0.0
        %532 = vmatprep.subr.mxu0 0.0
        %533 = vmatpush1.msra.mxu0 0.0
        %534 = vmatprep.mubr.f32.mxu0 0.0
        %535 = vmatmul.mubr.f32.gmra.mrb[0].mxu0 %v464
        %v536 = vpop.f32.mrb[0].mxu0
        %v537 = vadd.f32 0.0, %v536
        %v538 = vpop.f32.mrb[0].mxu0
        %539 = vdwg.mxu0
        %v541 = vlaneseq
        %v542 = vshrl.u32 %v541, 7
        %v543 = vsub.s32 0, %v542
        %v544 = vrot.slane %v366, %v543
        %v546 = vmul.f32 %v449, %v544
        %v547 = vsel %vm378, %v546, 0.0
        %548 = vadd.xlane.f32.xlu0 %v547
        %v549 = vpop.xlane.xlu0 %548
        %v550 = vadd.f32 %v549, %v537
        %v551 = vld [vmem:[#allocation5] sm:$0x1]
        %v553 = vlaneseq
        %v554 = vshrl.u32 %v553, 7
        %v555 = vsub.s32 0, %v554
        %v556 = vrot.slane %v551, %v555
        %v558 = vadd.f32 %v550, %v556
        %vm559 = vcmp.ge.s32.totalorder %v452, 0
        %v560 = vsel %vm559, %v558, -1e+30
        // Predicated region
        $region61: #{tpu_custom_call.1} parent=47 // pred_check
          %p561 = pneg %p341
        $region62: #{tpu_custom_call.1} parent=47 // pred_check_branch
          %563 = sbr.rel (%p561) target = $region64
        $region63: #{tpu_custom_call.1} parent=47 // pred_region
          %v564 = vld [vmem:[#allocation2] sm:$0x1]
          %vm565 = vcmask 7168
          %v566 = vsel %vm565, %v560, -inf
          %v567 = vrot.slane %v566, 4
          %v568 = vmax.f32 %v566, %v567
          %v569 = vrot.slane %v568, 2
          %v570 = vmax.f32 %v568, %v569
          %v571 = vrot.slane %v570, 1
          %v572 = vmax.f32 %v570, %v571
          %v573 = vmax.f32 %v564, %v572
          %v574 = vld [vmem:[#allocation3] sm:$0x1]
          %v575 = vsub.f32 %v564, %v573
          %v576 = vmul.f32 %v575, 1.442695
          %v577 = vpow.pop %v576
          %v578 = vmul.f32 %v574, %v577
          %v580 = vlaneseq
          %v581 = vshrl.u32 %v580, 7
          %v582 = vsub.s32 0, %v581
          %v583 = vrot.slane %v573, %v582
          %v585 = vsub.f32 %v560, %v583
          %v586 = vmul.f32 %v585, 1.442695
          %v587 = vpow.pop %v586
          %v588 = vsel %vm565, %v587, 0.0
          %v589 = vrot.slane %v588, 4
          %v590 = vadd.f32 %v588, %v589
          %v591 = vrot.slane %v590, 2
          %v592 = vadd.f32 %v590, %v591
          %v593 = vrot.slane %v592, 1
          %v594 = vadd.f32 %v592, %v593
          %v595 = vadd.f32 %v578, %v594
          %vm596 = vcmask 0
          %597 = vst.msk [vmem:[#allocation3] sm:$0x1] %vm596, %v595
          %598 = vst.msk [vmem:[#allocation2] sm:$0x1] %vm596, %v573
        $region64: #{tpu_custom_call.1} parent=47 // pred_fallthru
          _
        %p599 = scmp.eq.s32.totalorder %s31, 1
        // Predicated region
        $region65: #{tpu_custom_call.1} parent=47 // pred_check
          %p600 = pneg %p599
        $region66: #{tpu_custom_call.1} parent=47 // pred_check_branch
          %602 = sbr.rel (%p600) target = $region68
        $region67: #{tpu_custom_call.1} parent=47 // pred_region
          %v603 = vld [vmem:[#allocation3] sm:$0x1]
          %v604 = vrcp.pop %v603
          %v605 = vld [vmem:[#allocation2] sm:$0x1]
          %v607 = vlaneseq
          %v608 = vshrl.u32 %v607, 7
          %v609 = vsub.s32 0, %v608
          %v610 = vrot.slane %v605, %v609
          %v612 = vsub.f32 %v560, %v610
          %v613 = vmul.f32 %v612, 1.442695
          %v614 = vpow.pop %v613
          %v616 = vlaneseq
          %v617 = vshrl.u32 %v616, 7
          %v618 = vsub.s32 0, %v617
          %v619 = vrot.slane %v604, %v618
          %v621 = vmul.f32 %v614, %v619
          %623 = vset.pattern.permute.xlu0 0
          %624 = vperm.xlu0 %623, %v621
          %v625 = vpop.permute.xlu0 %624
          %v627 = vmul.f32 %v625, %v449
          %v628 = vadd.f32 %v627, %v365
          %629 = vst.msk [vmem:[%s335] sm:$0xff] %vm378, %v628
        $region68: #{tpu_custom_call.1} parent=47 // pred_fallthru
          _
        %s630 = sand.u32 %s206, 1
        %s631 = scalar_lea.sflag [#allocation8], %s630
        %s632 = sand.u32 %s206, 1
        %s633 = smul.addr %s632, 8
        %s634 = scalar_lea.vmem [#allocation11], %s633
        // Predicated region
        $region69: #{tpu_custom_call.1} parent=47 // pred_check
          %p635 = pneg %p216
        $region70: #{tpu_custom_call.1} parent=47 // pred_check_branch
          %637 = sbr.rel (%p635) target = $region72
        $region71: #{tpu_custom_call.1} parent=47 // pred_region
          %s638 = smul.u32 %s31, %s32
          %s640 = ssub.s32 128, 128
          %641 = vsyncadd %s631, %s640
          %s642 = smul.addr %s638, 128
          %s643 = scalar_lea.hbm %s7, %s642
          %s645 = sshll.u32 %s634, 4
          %s646 = int_to_ptr.vmem [resolvable:$true] %s645
          %648 = dma.vmem_to_hbm [thread:$0]  %s646, 128, %s643, %s631
        $region72: #{tpu_custom_call.1} parent=47 // pred_fallthru
          _
      $region48: #{tpu_custom_call.1} parent=5 // pred_fallthru
        _
      %p649 = scmp.le.s32.totalorder 2, %s22
      // Predicated region
      $region73: #{tpu_custom_call.1} parent=5 // pred_check
        %p650 = pneg %p649
      $region74: #{tpu_custom_call.1} parent=5 // pred_check_branch
        %652 = sbr.rel (%p650) target = $region76
      $region75: #{tpu_custom_call.1} parent=5 // pred_region
        %s653 = ssub.s32 %s22, 2
        // Predicated region
        $region77: #{tpu_custom_call.1} parent=75 // pred_check
          %p654 = pneg %p222
        $region78: #{tpu_custom_call.1} parent=75 // pred_check_branch
          %656 = sbr.rel (%p654) target = $region80
        $region79: #{tpu_custom_call.1} parent=75 // pred_region
          %s657 = sand.u32 %s207, 1
          %s658 = scalar_lea.sflag [#allocation8], %s657
          %s659 = sand.u32 %s207, 1
          %s660 = smul.addr %s659, 8
          %s661 = scalar_lea.vmem [#allocation11], %s660
          %662 = dma.done %s658, 128
        $region80: #{tpu_custom_call.1} parent=75 // pred_fallthru
          _
      $region76: #{tpu_custom_call.1} parent=5 // pred_fallthru
        _
    $region6: #{tpu_custom_call.1} parent=1 // loop_footer
      %s26 = sadd.s32 1, %s22
    $region7: #{tpu_custom_call.1} parent=1 // loop_footer_branch
      %21 = sbr.rel target = $region3
    $region8: #{tpu_custom_call.1} parent=1 // loop_exit
      _
    %663 = vsyncpa [#allocation7], 1
    %s664 = scalar_lea.sflag [#allocation7], 1
    %665 = vsyncpa %s664, 1
    %666 = vsyncpa [#allocation10], 1
    %667 = vsyncpa [#allocation8], 1
    %s668 = scalar_lea.sflag [#allocation8], 1
    %669 = vsyncpa %s668, 1

</llo_original>
